<compile_context>
chip_gen: v5e
topology: v5e:2x2
jax: 0.10.0
libtpu: 0.0.40
codegen_flags: <defaults>
</compile_context>

<pallas_src>
import functools
from typing import NamedTuple

import jax
import jax.numpy as jnp
from jax.experimental import pallas as pl
from jax.experimental.pallas import tpu as pltpu

_NEG = -1e30


def _round_up(x, m):
    return (x + m - 1) // m * m


class SlabLayout(NamedTuple):
    """Static row/lane layout of the packed parameter slab (Python ints, hashable)."""
    E: int            # GRU input width
    H: int            # hidden width
    A: int            # action_num
    D: int            # dense width (64)
    lanes: int        # slab lane width (multiple of 128)
    r_gru_b: int      # row of fused GRU bias (GRU weights occupy rows [0, E+H))
    r_dense_w: int    # first row of dense weight block  (H rows)
    r_dense_b: int    # row of dense bias
    r_cls_w: int      # first row of classifier weight block (lanes rows)
    r_cls_b: int      # row of classifier bias
    rows: int         # total slab rows


def _slab_layout(E, H, A, D=64):
    lanes = _round_up(max(4 * H, D, A), 128)
    r_gru_b = E + H
    r_dense_w = _round_up(r_gru_b + 1, 8)        # sublane-aligned section starts
    r_dense_b = r_dense_w + H
    r_cls_w = _round_up(r_dense_b + 1, 8)
    r_cls_b = r_cls_w + lanes
    rows = _round_up(r_cls_b + 1, 8)
    return SlabLayout(E, H, A, D, lanes, r_gru_b, r_dense_w, r_dense_b,
                      r_cls_w, r_cls_b, rows)


def _cm_step_kernel(x_ref, h0_ref, w_ref, out_ref, h_scr, *, lo: SlabLayout):
    """One RL step per grid point.  All params resident in VMEM (constant blocks).

    x_ref  : [1, B, E]      this step's GRU input
    h0_ref : [B, H]         initial hidden state (used only at step 0)
    w_ref  : [rows, lanes]  packed parameter slab (see SlabLayout)
    out_ref: [1, B, lanes]  lane-dense output slab for this step:
                              lanes [0,H)     -> h_n (rl_new_state)
                              lanes [H,H+A)   -> stopScore
                              lane  H+A       -> isStop (argmax index as f32)
    h_scr  : [B, H]         VMEM carry of the hidden state across grid steps
    """
    E, H, A, L = lo.E, lo.H, lo.A, lo.lanes
    s = pl.program_id(0)

    @pl.when(s == 0)
    def _():
        h_scr[...] = h0_ref[...]

    h = h_scr[...]                                   # [B, H]
    x_t = x_ref[0]                                   # [B, E]
    xh = jnp.concatenate([x_t, h], axis=1)           # [B, E+H]

    # --- GRU cell: ONE fused MXU pass.  Lane groups: [r | z | n_x | n_h]. ---
    wg = w_ref[0:E + H, :]                           # [E+H, L]
    bg = w_ref[lo.r_gru_b:lo.r_gru_b + 1, :]         # [1, L]
    g = jnp.dot(xh, wg, preferred_element_type=jnp.float32) + bg
    r = jax.nn.sigmoid(g[:, 0:H])
    z = jax.nn.sigmoid(g[:, H:2 * H])
    n = jnp.tanh(g[:, 2 * H:3 * H] + r * g[:, 3 * H:4 * H])
    h_new = (1.0 - z) * n + z * h                    # [B, H]
    h_scr[...] = h_new

    # --- rl_h1 = relu(DenseLayer(h_new)); padded lanes stay exactly 0. ---
    wd = w_ref[lo.r_dense_w:lo.r_dense_w + H, :]     # [H, L]
    bd = w_ref[lo.r_dense_b:lo.r_dense_b + 1, :]     # [1, L]
    h1 = jnp.maximum(jnp.dot(h_new, wd, preferred_element_type=jnp.float32) + bd, 0.0)

    # --- stopScore = Classifier(rl_h1); padded lanes carry -1e30 via the bias. ---
    wc = w_ref[lo.r_cls_w:lo.r_cls_w + L, :]         # [L, L]
    bc = w_ref[lo.r_cls_b:lo.r_cls_b + 1, :]         # [1, L]
    scores = jnp.dot(h1, wc, preferred_element_type=jnp.float32) + bc    # [B, L]

    # argmax over the A real lanes (padded lanes are -1e30); first-max-wins ties
    # (matches torch.argmax).  Index stored as f32 (exact for A < 2^24).
    col = jax.lax.broadcasted_iota(jnp.int32, scores.shape, 1)
    maxv = jnp.max(scores, axis=1, keepdims=True)
    idx = jnp.min(jnp.where(scores >= maxv, col, L), axis=1, keepdims=True)

    # Single unmasked full-width store of the lane-dense output slab.
    B = h_new.shape[0]
    pad = jnp.zeros((B, L - (H + A + 1)), jnp.float32)
    out_ref[0] = jnp.concatenate(
        [h_new, scores[:, 0:A], idx.astype(jnp.float32), pad], axis=1)


def _rollout_call(w_slab, x_steps, h0, lo: SlabLayout):
    """One pallas_call over all steps; weights resident in VMEM; h carried in scratch."""
    S, B, E = x_steps.shape
    H, A, L = lo.H, lo.A, lo.lanes

    step_flops = 2 * B * (E + H) * 4 * H + 2 * B * H * L + 2 * B * L * L
    cost = pl.CostEstimate(
        flops=S * step_flops,
        transcendentals=S * B * 3 * H,
        bytes_accessed=int(w_slab.size * 4 + x_steps.size * 4 + h0.size * 4
                           + S * B * L * 4),
    )

    out = pl.pallas_call(
        functools.partial(_cm_step_kernel, lo=lo),
        grid_spec=pltpu.PrefetchScalarGridSpec(
            num_scalar_prefetch=0,
            grid=(S,),
            in_specs=[
                pl.BlockSpec((1, B, E), lambda s: (s, 0, 0)),      # per-step input
                pl.BlockSpec((B, H), lambda s: (0, 0)),            # h0 (fetched once)
                pl.BlockSpec((lo.rows, L), lambda s: (0, 0)),      # weights (fetched once)
            ],
            out_specs=pl.BlockSpec((1, B, L), lambda s: (s, 0, 0)),
            scratch_shapes=[pltpu.VMEM((B, H), jnp.float32)],      # hidden-state carry
        ),
        out_shape=jax.ShapeDtypeStruct((S, B, L), jnp.float32),
        compiler_params=pltpu.CompilerParams(dimension_semantics=("arbitrary",)),
        cost_estimate=cost,
    )(x_steps, h0, w_slab)

    scores = out[:, :, H:H + A]                       # [S, B, A]
    is_stop = out[:, :, H + A].astype(jnp.int32)      # [S, B]
    h_seq = out[:, :, 0:H]                            # [S, B, H]
    return scores, is_stop, h_seq


@functools.partial(jax.jit, static_argnames=("lo",))
def cm_model_forward(w_slab, rl_input, rl_state, *, lo: SlabLayout):
    """Pallas implementation of CM_Model.forward(rdm_model, rl_input, rl_state).

    rl_input : [B, T, E] float32 (T must be 1, as required by the PyTorch reshape)
    rl_state : [1, B, H] float32
    returns  : (stopScore [B, A], isStop [B] int32, rl_new_state [1, B, H])
    """
    B, T, E = rl_input.shape
    assert T == 1, "PyTorch reshape([B, hidden]) requires max_word_num == 1"
    x_steps = jnp.transpose(rl_input, (1, 0, 2))      # [1, B, E]
    scores, is_stop, h_seq = _rollout_call(w_slab, x_steps, rl_state[0], lo)
    return scores[0], is_stop[0], h_seq[-1][None]


@functools.partial(jax.jit, static_argnames=("lo",))
def cm_model_rollout(w_slab, step_inputs, rl_state, *, lo: SlabLayout):
    """Hoisted RL loop: equivalent to calling CM_Model.forward once per step and feeding
    rl_new_state back in — but ONE pallas_call, weight DMA and dispatch amortized.

    step_inputs : [S, B, E] float32 (precomputed per-step inputs)
    rl_state    : [1, B, H] float32
    returns     : (stopScore [S,B,A], isStop [S,B] int32, rl_states [S,B,H])
    """
    return _rollout_call(w_slab, step_inputs, rl_state[0], lo)


def init_raw_params(key, emb_dim, hidden_dim, action_num, dense_dim=64):
    """Per-gate params mirroring PyTorch default uniform(-1/sqrt(fan), 1/sqrt(fan))."""
    ks = jax.random.split(key, 8)
    kg = 1.0 / jnp.sqrt(hidden_dim)
    kd = 1.0 / jnp.sqrt(hidden_dim)
    kc = 1.0 / jnp.sqrt(dense_dim)
    u = lambda k, shape, s: jax.random.uniform(k, shape, jnp.float32, -s, s)
    return {
        # GRU weights, gate order (r, z, n), stored transposed [in, out] per gate.
        "w_ih": u(ks[0], (3, emb_dim, hidden_dim), kg),
        "w_hh": u(ks[1], (3, hidden_dim, hidden_dim), kg),
        "b_ih": u(ks[2], (3, 1, hidden_dim), kg),
        "b_hh": u(ks[3], (3, 1, hidden_dim), kg),
        # DenseLayer: Linear(hidden_dim, 64)
        "w_dense": u(ks[4], (hidden_dim, dense_dim), kd),
        "b_dense": u(ks[5], (1, dense_dim), kd),
        # Classifier: Linear(64, action_num)
        "w_cls": u(ks[6], (dense_dim, action_num), kc),
        "b_cls": u(ks[7], (1, action_num), kc),
    }


def pack_params(raw):
    """Pack everything into one lane-dense f32 slab [rows, lanes] (single HBM->VMEM DMA)."""
    E, H = raw["w_ih"].shape[1], raw["w_ih"].shape[2]
    D, A = raw["w_cls"].shape
    lo = _slab_layout(E, H, A, D)
    f32 = jnp.float32
    slab = jnp.zeros((lo.rows, lo.lanes), f32)

    # Block-structured fused GRU weight; lane groups of width H: [r | z | n_x | n_h].
    gru_x = jnp.concatenate(
        [raw["w_ih"][0], raw["w_ih"][1], raw["w_ih"][2], jnp.zeros((E, H), f32)], axis=1)
    gru_h = jnp.concatenate(
        [raw["w_hh"][0], raw["w_hh"][1], jnp.zeros((H, H), f32), raw["w_hh"][2]], axis=1)
    gru_b = jnp.concatenate(
        [raw["b_ih"][0] + raw["b_hh"][0],       # r: b_ir + b_hr
         raw["b_ih"][1] + raw["b_hh"][1],       # z: b_iz + b_hz
         raw["b_ih"][2],                        # n x-path: b_in
         raw["b_hh"][2]], axis=1)               # n h-path: b_hn (inside r * (.))
    slab = slab.at[0:E, 0:4 * H].set(gru_x)
    slab = slab.at[E:E + H, 0:4 * H].set(gru_h)
    slab = slab.at[lo.r_gru_b, 0:4 * H].set(gru_b[0])

    # DenseLayer (lane-padded with zeros; padded lanes stay exactly 0 through relu).
    slab = slab.at[lo.r_dense_w:lo.r_dense_w + H, 0:D].set(raw["w_dense"])
    slab = slab.at[lo.r_dense_b, 0:D].set(raw["b_dense"][0])

    # Classifier (lane-padded; padded-lane bias = -1e30 so max/argmax ignore them).
    slab = slab.at[lo.r_cls_w:lo.r_cls_w + D, 0:A].set(raw["w_cls"])
    bc = jnp.full((lo.lanes,), _NEG, f32).at[0:A].set(raw["b_cls"][0])
    slab = slab.at[lo.r_cls_b, :].set(bc)
    return slab, lo


def _reference_forward(raw, rl_input, rl_state):
    """Pure-JAX reference of CM_Model.forward on the original per-gate parameters."""
    B, T, E = rl_input.shape
    h = rl_state[0]
    outs = []
    for t in range(T):
        x_t = rl_input[:, t, :]
        r = jax.nn.sigmoid(x_t @ raw["w_ih"][0] + raw["b_ih"][0]
                           + h @ raw["w_hh"][0] + raw["b_hh"][0])
        z = jax.nn.sigmoid(x_t @ raw["w_ih"][1] + raw["b_ih"][1]
                           + h @ raw["w_hh"][1] + raw["b_hh"][1])
        n = jnp.tanh(x_t @ raw["w_ih"][2] + raw["b_ih"][2]
                     + r * (h @ raw["w_hh"][2] + raw["b_hh"][2]))
        h = (1.0 - z) * n + z * h
        outs.append(h)
    rl_output = jnp.stack(outs, axis=1)
    feat = rl_output.reshape(B, h.shape[1])
    h1 = jax.nn.relu(feat @ raw["w_dense"] + raw["b_dense"])
    scores = h1 @ raw["w_cls"] + raw["b_cls"]
    return scores, jnp.argmax(scores, axis=1), h[None]


def _reference_rollout(raw, step_inputs, rl_state):
    h = rl_state[0]
    scores_l, stop_l, h_l = [], [], []
    for s in range(step_inputs.shape[0]):
        sc, st, hn = _reference_forward(raw, step_inputs[s][:, None, :], h[None])
        h = hn[0]
        scores_l.append(sc)
        stop_l.append(st)
        h_l.append(h)
    return jnp.stack(scores_l), jnp.stack(stop_l), jnp.stack(h_l)


if __name__ == "__main__":
    # Small shapes consistent with the module: word_embedding_dim E = 32, hidden H = 32,
    # action_num A = 2, batch B = 8, max_word_num T = 1 (required by the reshape).
    B, T, E, H, A = 8, 1, 32, 32, 2
    S = 6   # hoisted RL rollout length for the multi-step check

    key = jax.random.PRNGKey(0)
    k_p, k_x, k_h, k_r = jax.random.split(key, 4)
    raw = init_raw_params(k_p, E, H, A)
    w_slab, lo = pack_params(raw)
    rl_input = jax.random.normal(k_x, (B, T, E), jnp.float32)
    rl_state = jax.random.normal(k_h, (1, B, H), jnp.float32)

    # --- single-step forward (matches CM_Model.forward exactly) ---
    stop_score, is_stop, rl_new_state = cm_model_forward(w_slab, rl_input, rl_state, lo=lo)
    jax.block_until_ready((stop_score, is_stop, rl_new_state))

    ref_score, ref_stop, ref_state = _reference_forward(raw, rl_input, rl_state)
    assert stop_score.shape == (B, A) and is_stop.shape == (B,)
    assert rl_new_state.shape == (1, B, H)
    assert jnp.allclose(stop_score, ref_score, atol=1e-4, rtol=1e-4)
    assert jnp.array_equal(is_stop, ref_stop.astype(jnp.int32))
    assert jnp.allclose(rl_new_state, ref_state, atol=1e-4, rtol=1e-4)

    # --- hoisted multi-step RL rollout: one pallas_call, grid over steps ---
    step_inputs = jax.random.normal(k_r, (S, B, E), jnp.float32)
    scores_s, stops_s, h_s = cm_model_rollout(w_slab, step_inputs, rl_state, lo=lo)
    jax.block_until_ready((scores_s, stops_s, h_s))

    r_scores, r_stops, r_h = _reference_rollout(raw, step_inputs, rl_state)
    assert jnp.allclose(scores_s, r_scores, atol=1e-4, rtol=1e-4)
    assert jnp.array_equal(stops_s, r_stops.astype(jnp.int32))
    assert jnp.allclose(h_s, r_h, atol=1e-4, rtol=1e-4)

    print("KERNEL_OK")
</pallas_src>

<mosaic_0001>
module attributes {stable_mosaic.version = 11 : i64} {
  func.func @_cm_step_kernel(%arg0: i32, %arg1: memref<1x8x32xf32, #tpu.memory_space<vmem>>, %arg2: memref<8x32xf32, #tpu.memory_space<vmem>>, %arg3: memref<248x128xf32, #tpu.memory_space<vmem>>, %arg4: memref<1x8x128xf32, #tpu.memory_space<vmem>>, %arg5: memref<8x32xf32, #tpu.memory_space<vmem>>) attributes {dimension_semantics = [#tpu.dimension_semantics<arbitrary>], iteration_bounds = array<i64: 1>, scalar_prefetch = 0 : i64, scratch_operands = 1 : i64, tpu.core_type = #tpu.core_type<tc>, window_params = [{transform_indices = @transform_0, window_bounds = array<i64: 1, 8, 32>}, {pipeline_mode = #tpu.pipeline_mode<synchronous>, transform_indices = @transform_1, window_bounds = array<i64: 8, 32>}, {pipeline_mode = #tpu.pipeline_mode<synchronous>, transform_indices = @transform_2, window_bounds = array<i64: 248, 128>}, {transform_indices = @transform_3, window_bounds = array<i64: 1, 8, 128>}]} {
    %c0_i32 = arith.constant 0 : i32
    %0 = arith.cmpi eq, %arg0, %c0_i32 : i32
    %1 = arith.extui %0 : i1 to i32
    %c0_i32_0 = arith.constant 0 : i32
    %2 = arith.cmpi ne, %1, %c0_i32_0 : i32
    scf.if %2 {
      %c0_26 = arith.constant 0 : index
      %c0_27 = arith.constant 0 : index
      %63 = vector.load %arg2[%c0_26, %c0_27] : memref<8x32xf32, #tpu.memory_space<vmem>>, vector<8x32xf32>
      %c0_28 = arith.constant 0 : index
      %c0_29 = arith.constant 0 : index
      %64 = vector.load %arg5[%c0_28, %c0_29] : memref<8x32xf32, #tpu.memory_space<vmem>>, vector<8x32xf32>
      tpu.vector_store %arg5[%c0_28, %c0_29], %63 {strides = array<i32>} : memref<8x32xf32, #tpu.memory_space<vmem>>, vector<8x32xf32>,
    } else {
    }
    %c0 = arith.constant 0 : index
    %c0_1 = arith.constant 0 : index
    %3 = vector.load %arg5[%c0, %c0_1] : memref<8x32xf32, #tpu.memory_space<vmem>>, vector<8x32xf32>
    %c0_2 = arith.constant 0 : index
    %c0_3 = arith.constant 0 : index
    %c0_4 = arith.constant 0 : index
    %4 = vector.load %arg1[%c0_2, %c0_3, %c0_4] : memref<1x8x32xf32, #tpu.memory_space<vmem>>, vector<1x8x32xf32>
    %5 = vector.shape_cast %4 : vector<1x8x32xf32> to vector<8x32xf32>
    %6 = tpu.concatenate %5, %3 in 1 : vector<8x32xf32>, vector<8x32xf32> -> vector<8x64xf32>
    %c0_5 = arith.constant 0 : index
    %c0_6 = arith.constant 0 : index
    %7 = vector.load %arg3[%c0_5, %c0_6] : memref<248x128xf32, #tpu.memory_space<vmem>>, vector<64x128xf32>
    %c64 = arith.constant 64 : index
    %c0_7 = arith.constant 0 : index
    %8 = vector.load %arg3[%c64, %c0_7] : memref<248x128xf32, #tpu.memory_space<vmem>>, vector<1x128xf32>
    %cst = arith.constant dense<0.000000e+00> : vector<8x128xf32>
    %9 = tpu.matmul %6, %7, %cst {dimension_numbers = #tpu.dot_dimension_numbers<[1], [0], [0], [1], [0, 0, 1, 1], [], []>} : vector<8x64xf32>, vector<64x128xf32>, vector<8x128xf32> -> vector<8x128xf32>
    %10 = vector.broadcast %8 : vector<1x128xf32> to vector<8x128xf32>
    %11 = arith.addf %9, %10 : vector<8x128xf32>
    %12 = vector.extract_strided_slice %11 {offsets = [0, 0], sizes = [8, 32], strides = [1, 1]} : vector<8x128xf32> to vector<8x32xf32>
    %13 = arith.negf %12 : vector<8x32xf32>
    %14 = math.exp %13 : vector<8x32xf32>
    %cst_8 = arith.constant 1.000000e+00 : f32
    %15 = vector.broadcast %cst_8 : f32 to vector<8x32xf32>
    %16 = arith.addf %15, %14 : vector<8x32xf32>
    %17 = arith.divf %15, %16 : vector<8x32xf32>
    %18 = vector.extract_strided_slice %11 {offsets = [0, 32], sizes = [8, 32], strides = [1, 1]} : vector<8x128xf32> to vector<8x32xf32>
    %19 = arith.negf %18 : vector<8x32xf32>
    %20 = math.exp %19 : vector<8x32xf32>
    %cst_9 = arith.constant 1.000000e+00 : f32
    %21 = vector.broadcast %cst_9 : f32 to vector<8x32xf32>
    %22 = arith.addf %21, %20 : vector<8x32xf32>
    %23 = arith.divf %21, %22 : vector<8x32xf32>
    %24 = vector.extract_strided_slice %11 {offsets = [0, 64], sizes = [8, 32], strides = [1, 1]} : vector<8x128xf32> to vector<8x32xf32>
    %25 = vector.extract_strided_slice %11 {offsets = [0, 96], sizes = [8, 32], strides = [1, 1]} : vector<8x128xf32> to vector<8x32xf32>
    %26 = arith.mulf %17, %25 : vector<8x32xf32>
    %27 = arith.addf %24, %26 : vector<8x32xf32>
    %28 = math.tanh %27 : vector<8x32xf32>
    %cst_10 = arith.constant 1.000000e+00 : f32
    %29 = vector.broadcast %cst_10 : f32 to vector<8x32xf32>
    %30 = arith.subf %29, %23 : vector<8x32xf32>
    %31 = arith.mulf %30, %28 : vector<8x32xf32>
    %32 = arith.mulf %23, %3 : vector<8x32xf32>
    %33 = arith.addf %31, %32 : vector<8x32xf32>
    %c0_11 = arith.constant 0 : index
    %c0_12 = arith.constant 0 : index
    %34 = vector.load %arg5[%c0_11, %c0_12] : memref<8x32xf32, #tpu.memory_space<vmem>>, vector<8x32xf32>
    tpu.vector_store %arg5[%c0_11, %c0_12], %33 {strides = array<i32>} : memref<8x32xf32, #tpu.memory_space<vmem>>, vector<8x32xf32>,
    %c72 = arith.constant 72 : index
    %c0_13 = arith.constant 0 : index
    %35 = vector.load %arg3[%c72, %c0_13] : memref<248x128xf32, #tpu.memory_space<vmem>>, vector<32x128xf32>
    %c104 = arith.constant 104 : index
    %c0_14 = arith.constant 0 : index
    %36 = vector.load %arg3[%c104, %c0_14] : memref<248x128xf32, #tpu.memory_space<vmem>>, vector<1x128xf32>
    %cst_15 = arith.constant dense<0.000000e+00> : vector<8x128xf32>
    %37 = tpu.matmul %33, %35, %cst_15 {dimension_numbers = #tpu.dot_dimension_numbers<[1], [0], [0], [1], [0, 0, 1, 1], [], []>} : vector<8x32xf32>, vector<32x128xf32>, vector<8x128xf32> -> vector<8x128xf32>
    %38 = vector.broadcast %36 : vector<1x128xf32> to vector<8x128xf32>
    %39 = arith.addf %37, %38 : vector<8x128xf32>
    %cst_16 = arith.constant 0.000000e+00 : f32
    %40 = vector.broadcast %cst_16 : f32 to vector<8x128xf32>
    %41 = arith.maximumf %39, %40 : vector<8x128xf32>
    %c112 = arith.constant 112 : index
    %c0_17 = arith.constant 0 : index
    %42 = vector.load %arg3[%c112, %c0_17] : memref<248x128xf32, #tpu.memory_space<vmem>>, vector<128x128xf32>
    %c240 = arith.constant 240 : index
    %c0_18 = arith.constant 0 : index
    %43 = vector.load %arg3[%c240, %c0_18] : memref<248x128xf32, #tpu.memory_space<vmem>>, vector<1x128xf32>
    %cst_19 = arith.constant dense<0.000000e+00> : vector<8x128xf32>
    %44 = tpu.matmul %41, %42, %cst_19 {dimension_numbers = #tpu.dot_dimension_numbers<[1], [0], [0], [1], [0, 0, 1, 1], [], []>} : vector<8x128xf32>, vector<128x128xf32>, vector<8x128xf32> -> vector<8x128xf32>
    %45 = vector.broadcast %43 : vector<1x128xf32> to vector<8x128xf32>
    %46 = arith.addf %44, %45 : vector<8x128xf32>
    %47 = tpu.iota {dimensions = array<i32: 1>} : vector<8x128xi32>
    %cst_20 = arith.constant dense<0xFF800000> : vector<8xf32>
    %48 = vector.multi_reduction <maximumf>, %46, %cst_20 [1] : vector<8x128xf32> to vector<8xf32>
    %49 = vector.shape_cast %48 : vector<8xf32> to vector<8x1xf32>
    %50 = vector.broadcast %49 : vector<8x1xf32> to vector<8x128xf32>
    %51 = arith.cmpf oge, %46, %50 : vector<8x128xf32>
    %c128_i32 = arith.constant 128 : i32
    %52 = vector.broadcast %c128_i32 : i32 to vector<8x128xi32>
    %53 = arith.select %51, %47, %52 : vector<8x128xi1>, vector<8x128xi32>
    %cst_21 = arith.constant dense<2147483647> : vector<8xi32>
    %54 = vector.multi_reduction <minsi>, %53, %cst_21 [1] : vector<8x128xi32> to vector<8xi32>
    %55 = vector.shape_cast %54 : vector<8xi32> to vector<8x1xi32>
    %cst_22 = arith.constant 0.000000e+00 : f32
    %56 = vector.broadcast %cst_22 : f32 to vector<8x93xf32>
    %57 = vector.extract_strided_slice %46 {offsets = [0, 0], sizes = [8, 2], strides = [1, 1]} : vector<8x128xf32> to vector<8x2xf32>
    %58 = arith.sitofp %55 : vector<8x1xi32> to vector<8x1xf32>
    %59 = tpu.concatenate %33, %57, %58, %56 in 1 : vector<8x32xf32>, vector<8x2xf32>, vector<8x1xf32>, vector<8x93xf32> -> vector<8x128xf32>
    %c0_23 = arith.constant 0 : index
    %c0_24 = arith.constant 0 : index
    %c0_25 = arith.constant 0 : index
    %60 = vector.load %arg4[%c0_23, %c0_24, %c0_25] : memref<1x8x128xf32, #tpu.memory_space<vmem>>, vector<1x8x128xf32>
    %61 = vector.shape_cast %60 : vector<1x8x128xf32> to vector<8x128xf32>
    %62 = vector.shape_cast %59 : vector<8x128xf32> to vector<1x8x128xf32>
    tpu.vector_store %arg4[%c0_23, %c0_24, %c0_25], %62 {strides = array<i32>} : memref<1x8x128xf32, #tpu.memory_space<vmem>>, vector<1x8x128xf32>,
    return
  }
  func.func @transform_0(%arg0: i32) -> (i32, i32, i32) {
    %c0_i32 = arith.constant 0 : i32
    %c0_i32_0 = arith.constant 0 : i32
    %c0_i32_1 = arith.constant 0 : i32
    return %arg0, %c0_i32, %c0_i32_0 : i32, i32, i32
  }
  func.func @transform_1(%arg0: i32) -> (i32, i32) {
    %c0_i32 = arith.constant 0 : i32
    %c0_i32_0 = arith.constant 0 : i32
    %c0_i32_1 = arith.constant 0 : i32
    return %c0_i32, %c0_i32_0 : i32, i32
  }
  func.func @transform_2(%arg0: i32) -> (i32, i32) {
    %c0_i32 = arith.constant 0 : i32
    %c0_i32_0 = arith.constant 0 : i32
    %c0_i32_1 = arith.constant 0 : i32
    return %c0_i32, %c0_i32_0 : i32, i32
  }
  func.func @transform_3(%arg0: i32) -> (i32, i32, i32) {
    %c0_i32 = arith.constant 0 : i32
    %c0_i32_0 = arith.constant 0 : i32
    %c0_i32_1 = arith.constant 0 : i32
    return %arg0, %c0_i32, %c0_i32_0 : i32, i32, i32
  }
}

</mosaic_0001>

<llo_original>
// kernel: cm_model_forward.1
$region0: #{cm_model_forward.1}
  #allocation0 [shape = 'u32[]', space=smem, size = 0x4, offset = 0x4, fixed_abs, tag = 'smem constant byte address 0x4 - core index']
  #allocation1 [shape = 'u32[72,128]{1,0:T(1,128)}', space=vmem, size = 0x9000, scoped, tag = 'internal scratch']
  #allocation2 [shape = 'f32[8,32]{1,0:T(8,128)}', space=vmem, size = 0x1000, scoped, tag = 'scratch operand']
  %s0 = inlined_call_operand.hbm [shape: f32[1,8,32], index: 0, kind: input, shape index: {}]
  %s1 = inlined_call_operand.hbm [shape: f32[8,32], index: 1, kind: input, shape index: {}]
  %s2 = inlined_call_operand.hbm [shape: f32[248,128], index: 2, kind: input, shape index: {}]
  %s3 = inlined_call_operand.vmem [shape: f32[1,8,128], index: 3, kind: output, shape index: {}]
  %s4 = sld [smem:[#allocation0]]
  $region38: #{cm_model_forward.1} parent=0
    _
  %s6 = ssub.s32 1, %s4
  %s7 = scalar_select 0, %s6, %s4
  $region1: #{cm_model_forward.1} parent=0
    #allocation3 [shape = 'u8[4096]{0}', space=vmem, size = 0x1000, scoped, tag = 'input window, operand 0, single buffered']
    #allocation4 [shape = 's32[1]{0}', space=sflag, size = 0x4, scoped, tag = 'scoped memory for cm_model_forward.1']
    #allocation5 [shape = 'u8[4096]{0}', space=vmem, size = 0x1000, scoped, tag = 'input window, operand 1, single buffered']
    #allocation6 [shape = 's32[1]{0}', space=sflag, size = 0x4, scoped, tag = 'scoped memory for cm_model_forward.1']
    #allocation7 [shape = 'u8[126976]{0}', space=vmem, size = 0x1f000, scoped, tag = 'input window, operand 2, single buffered']
    %8 = vsyncpa [#allocation4], 0
    %9 = vsyncpa [#allocation6], 0
    // Predicated region
    $region2: #{cm_model_forward.1} parent=1 // pred_check
      _
    $region3: #{cm_model_forward.1} parent=1 // pred_check_branch
      %11 = sbr.rel (0) target = $region5
    $region4: #{cm_model_forward.1} parent=1 // pred_region
      %13 = vsyncadd [#allocation4], 0
      %s15 = sshll.u32 %s0, 4
      %s16 = int_to_ptr.hbm [resolvable:$true] %s15
      %s17 = sshll.u32 [#allocation3], 4
      %s18 = int_to_ptr.vmem [resolvable:$true] %s17
      %20 = dma.hbm_to_vmem [thread:$0]  %s16, 128, %s18, [#allocation4]
    $region5: #{cm_model_forward.1} parent=1 // pred_fallthru
      _
    // Predicated region
    $region6: #{cm_model_forward.1} parent=1 // pred_check
      _
    $region7: #{cm_model_forward.1} parent=1 // pred_check_branch
      %22 = sbr.rel (0) target = $region9
    $region8: #{cm_model_forward.1} parent=1 // pred_region
      %24 = vsyncadd [#allocation6], 0
      %s26 = sshll.u32 %s1, 4
      %s27 = int_to_ptr.hbm [resolvable:$true] %s26
      %s28 = sshll.u32 [#allocation5], 4
      %s29 = int_to_ptr.vmem [resolvable:$true] %s28
      %31 = dma.hbm_to_vmem [thread:$0]  %s27, 128, %s29, [#allocation6]
    $region9: #{cm_model_forward.1} parent=1 // pred_fallthru
      _
    // Predicated region
    $region10: #{cm_model_forward.1} parent=1 // pred_check
      _
    $region11: #{cm_model_forward.1} parent=1 // pred_check_branch
      %33 = sbr.rel (0) target = $region13
    $region12: #{cm_model_forward.1} parent=1 // pred_region
      %35 = vsyncadd [#allocation6], 0
      %s36 = sshll.u32 %s2, 4
      %s37 = int_to_ptr.hbm [resolvable:$true] %s36
      %s38 = sshll.u32 [#allocation7], 4
      %s39 = int_to_ptr.vmem [resolvable:$true] %s38
      %44 = dma.hbm_to_vmem [thread:$0]  %s37, 3968, %s39, [#allocation6], 128, 128, 8
    $region13: #{cm_model_forward.1} parent=1 // pred_fallthru
      _
    // Predicated region
    $region14: #{cm_model_forward.1} parent=1 // pred_check
      _
    $region15: #{cm_model_forward.1} parent=1 // pred_check_branch
      %46 = sbr.rel (0) target = $region17
    $region16: #{cm_model_forward.1} parent=1 // pred_region
      %48 = dma.done [#allocation4], 128
    $region17: #{cm_model_forward.1} parent=1 // pred_fallthru
      _
    // Predicated region
    $region18: #{cm_model_forward.1} parent=1 // pred_check
      _
    $region19: #{cm_model_forward.1} parent=1 // pred_check_branch
      %50 = sbr.rel (0) target = $region21
    $region20: #{cm_model_forward.1} parent=1 // pred_region
      %52 = dma.done [#allocation6], 128
    $region21: #{cm_model_forward.1} parent=1 // pred_fallthru
      _
    // Predicated region
    $region22: #{cm_model_forward.1} parent=1 // pred_check
      _
    $region23: #{cm_model_forward.1} parent=1 // pred_check_branch
      %54 = sbr.rel (0) target = $region25
    $region24: #{cm_model_forward.1} parent=1 // pred_region
      %56 = dma.done [#allocation6], 3968
    $region25: #{cm_model_forward.1} parent=1 // pred_fallthru
      _
    %p57 = scmp.eq.s32.totalorder 0, 0
    // Predicated region
    $region26: #{cm_model_forward.1} parent=1 // pred_check
      %p58 = pneg %p57
    $region27: #{cm_model_forward.1} parent=1 // pred_check_branch
      %60 = sbr.rel (%p58) target = $region29
    $region28: #{cm_model_forward.1} parent=1 // pred_region
      %v61 = vld [vmem:[#allocation5] sm:$0xff]
      %vm62 = vcmask 261120
      %63 = vst.msk [vmem:[#allocation2] sm:$0xff] %vm62, %v61
    $region29: #{cm_model_forward.1} parent=1 // pred_fallthru
      _
    %v64 = vld [vmem:[#allocation2] sm:$0xff]
    %v65 = vld [vmem:[#allocation3] sm:$0xff]
    %67 = vrot.lane.b32.xlu0 %v64, 32
    %v68 = vpop.permute.xlu0 %67
    %vm70 = vcmask 261120
    %v71 = vsel %vm70, %v65, %v68
    %v72 = vld [vmem:[#allocation7] sm:$0xff]
    %v73 = vld [vmem:[#allocation7 + $0x8] sm:$0xff]
    %v74 = vld [vmem:[#allocation7 + $0x10] sm:$0xff]
    %v75 = vld [vmem:[#allocation7 + $0x18] sm:$0xff]
    %v76 = vld [vmem:[#allocation7 + $0x20] sm:$0xff]
    %v77 = vld [vmem:[#allocation7 + $0x28] sm:$0xff]
    %v78 = vld [vmem:[#allocation7 + $0x30] sm:$0xff]
    %v79 = vld [vmem:[#allocation7 + $0x38] sm:$0xff]
    %v80 = vld [vmem:[#allocation7 + $0x40] sm:$0x1]
    %v81 = vperm.slane %v80, 0
    %vm82 = vcmask 523264
    %v84 = vsel %vm82, %v71, 0
    %86 = vmatpush.msra.mxu0 0.0
    %87 = vmatpush.msra.mxu0 0.0
    %88 = vmatpush.msra.mxu0 0.0
    %89 = vmatpush.msra.mxu0 0.0
    %90 = vmatpush.msra.mxu0 0.0
    %91 = vmatpush.msra.mxu0 0.0
    %92 = vmatpush.msra.mxu0 0.0
    %93 = vmatpush.msra.mxu0 0.0
    %94 = vmatpush.msra.mxu0 %v79
    %95 = vmatpush.msra.mxu0 %v78
    %96 = vmatpush.msra.mxu0 %v77
    %97 = vmatpush.msra.mxu0 %v76
    %98 = vmatpush.msra.mxu0 %v75
    %99 = vmatpush.msra.mxu0 %v74
    %100 = vmatpush.msra.mxu0 %v73
    %101 = vmatpush.msra.mxu0 %v72
    %102 = vmatmul.f32.gmra.mxu0 %v84
    %v103 = vpop.f32.mrf.mxu0
    %v104 = vadd.f32 %v81, %v103
    %105 = vdwg.mxu0
    %v106 = vxor.u32 %v104, 2147483648
    %v107 = vmul.f32 %v106, 1.442695
    %v108 = vpow.pop %v107
    %v109 = vadd.f32 %v108, 1.0
    %v110 = vrcp.pop %v109
    %v111 = vmul.f32 %v109, %v110
    %v112 = vsub.f32 1.0, %v111
    %v113 = vmul.f32 %v110, %v112
    %v114 = vadd.f32 %v110, %v113
    %vm115 = vweird.f32 %v109
    %vm116 = vweird.f32 %v110
    %vm117 = vmor %vm115, %vm116
    %v118 = vsel %vm117, %v110, %v114
    %v119 = vand.u32 2147483647, %v109
    %vm120 = vcmp.eq.f32.partialorder %v119, 8.507059e+37
    %v121 = vand.u32 %v109, 2147483648
    %v122 = vor.u32 1.1754944e-38, %v121
    %v123 = vsel %vm120, %v122, %v118
    %v124 = vmul.f32 1.0, %v123
    %126 = vrot.lane.b32.xlu0 %v104, 32
    %v127 = vpop.permute.xlu0 %126
    %v129 = vmul.f32 %v124, %v127
    %131 = vrot.lane.b32.xlu0 %v129, 64
    %v132 = vpop.permute.xlu0 %131
    %v134 = vadd.f32 %v104, %v132
    %v135 = vtanh.pop %v134
    %v136 = vsub.f32 1.0, %v124
    %138 = vrot.lane.b32.xlu0 %v135, 96
    %v139 = vpop.permute.xlu0 %138
    %v141 = vmul.f32 %v136, %v139
    %v142 = vmul.f32 %v124, %v68
    %v143 = vadd.f32 %v141, %v142
    %145 = vrot.lane.b32.xlu0 %v143, 96
    %v146 = vpop.permute.xlu0 %145
    %148 = vst.msk [vmem:[#allocation2] sm:$0xff] %vm70, %v146
    %v149 = vld [vmem:[#allocation7 + $0x48] sm:$0xff]
    %v150 = vld [vmem:[#allocation7 + $0x50] sm:$0xff]
    %v151 = vld [vmem:[#allocation7 + $0x58] sm:$0xff]
    %v152 = vld [vmem:[#allocation7 + $0x60] sm:$0xff]
    %v153 = vld [vmem:[#allocation7 + $0x68] sm:$0x1]
    %v154 = vperm.slane %v153, 0
    %v155 = vsel %vm70, %v146, 0
    %157 = vmatpush.msra.mxu0 0.0
    %158 = vmatpush.msra.mxu0 0.0
    %159 = vmatpush.msra.mxu0 0.0
    %160 = vmatpush.msra.mxu0 0.0
    %161 = vmatpush.msra.mxu0 0.0
    %162 = vmatpush.msra.mxu0 0.0
    %163 = vmatpush.msra.mxu0 0.0
    %164 = vmatpush.msra.mxu0 0.0
    %165 = vmatpush.msra.mxu0 0.0
    %166 = vmatpush.msra.mxu0 0.0
    %167 = vmatpush.msra.mxu0 0.0
    %168 = vmatpush.msra.mxu0 0.0
    %169 = vmatpush.msra.mxu0 %v152
    %170 = vmatpush.msra.mxu0 %v151
    %171 = vmatpush.msra.mxu0 %v150
    %172 = vmatpush.msra.mxu0 %v149
    %173 = vmatmul.f32.gmra.mxu0 %v155
    %v174 = vpop.f32.mrf.mxu0
    %v175 = vadd.f32 %v154, %v174
    %176 = vdwg.mxu0
    %v177 = vmax.f32 %v175, 0.0
    %v178 = vld [vmem:[#allocation7 + $0x70] sm:$0xff]
    %v179 = vld [vmem:[#allocation7 + $0x78] sm:$0xff]
    %v180 = vld [vmem:[#allocation7 + $0x80] sm:$0xff]
    %v181 = vld [vmem:[#allocation7 + $0x88] sm:$0xff]
    %v182 = vld [vmem:[#allocation7 + $0x90] sm:$0xff]
    %v183 = vld [vmem:[#allocation7 + $0x98] sm:$0xff]
    %v184 = vld [vmem:[#allocation7 + $0xa0] sm:$0xff]
    %v185 = vld [vmem:[#allocation7 + $0xa8] sm:$0xff]
    %v186 = vld [vmem:[#allocation7 + $0xb0] sm:$0xff]
    %v187 = vld [vmem:[#allocation7 + $0xb8] sm:$0xff]
    %v188 = vld [vmem:[#allocation7 + $0xc0] sm:$0xff]
    %v189 = vld [vmem:[#allocation7 + $0xc8] sm:$0xff]
    %v190 = vld [vmem:[#allocation7 + $0xd0] sm:$0xff]
    %v191 = vld [vmem:[#allocation7 + $0xd8] sm:$0xff]
    %v192 = vld [vmem:[#allocation7 + $0xe0] sm:$0xff]
    %v193 = vld [vmem:[#allocation7 + $0xe8] sm:$0xff]
    %v194 = vld [vmem:[#allocation7 + $0xf0] sm:$0x1]
    %v195 = vperm.slane %v194, 0
    %196 = vmatpush.msra.mxu0 %v193
    %197 = vmatpush.msra.mxu0 %v192
    %198 = vmatpush.msra.mxu0 %v191
    %199 = vmatpush.msra.mxu0 %v190
    %200 = vmatpush.msra.mxu0 %v189
    %201 = vmatpush.msra.mxu0 %v188
    %202 = vmatpush.msra.mxu0 %v187
    %203 = vmatpush.msra.mxu0 %v186
    %204 = vmatpush.msra.mxu0 %v185
    %205 = vmatpush.msra.mxu0 %v184
    %206 = vmatpush.msra.mxu0 %v183
    %207 = vmatpush.msra.mxu0 %v182
    %208 = vmatpush.msra.mxu0 %v181
    %209 = vmatpush.msra.mxu0 %v180
    %210 = vmatpush.msra.mxu0 %v179
    %211 = vmatpush.msra.mxu0 %v178
    %212 = vmatmul.f32.gmra.mxu0 %v177
    %v213 = vpop.f32.mrf.mxu0
    %v214 = vadd.f32 %v195, %v213
    %215 = vdwg.mxu0
    %v216 = vlaneseq
    %v217 = vand.u32 %v216, 127
    %218 = vmax.xlane.f32.xlu0 %v214
    %v219 = vpop.xlane.xlu0 %218
    %vm220 = vcmp.ge.f32.partialorder %v214, %v219
    %v221 = vsel %vm220, %v217, 128
    %v222 = vand.u32 %v221, 65535
    %v223 = vshra.s32 %v221, 16
    %v224 = vcvt.s32.f32 %v222
    %v225 = vcvt.s32.f32 %v223
    %226 = vmin.xlane.f32.xlu0 %v225
    %v227 = vpop.xlane.xlu0 %226
    %vm228 = vcmp.eq.f32.partialorder %v225, %v227
    %v229 = vsel %vm228, %v224, inf
    %230 = vmin.xlane.f32.xlu0 %v229
    %v231 = vpop.xlane.xlu0 %230
    %v232 = vcvt.f32.s32 %v231
    %v233 = vcvt.f32.s32 %v227
    %v234 = vshll.u32 %v233, 16
    %v235 = vadd.s32 %v234, %v232
    %v236 = vcvt.s32.f32 %v235
    %238 = vrot.lane.b32.xlu0 %v214, 32
    %v239 = vpop.permute.xlu0 %238
    %v241 = vsel %vm70, %v146, %v239
    %vm242 = vcmask 277504
    %v243 = vsel %vm242, %v241, %v236
    %vm244 = vcmask 285696
    %v245 = vsel %vm244, %v243, 0.0
    %246 = vst [vmem:[%s3] sm:$0xff] %v245
    // Predicated region
    $region30: #{cm_model_forward.1} parent=1 // pred_check
      _
    $region31: #{cm_model_forward.1} parent=1 // pred_check_branch
      %248 = sbr.rel (0) target = $region33
    $region32: #{cm_model_forward.1} parent=1 // pred_region
      _
    $region33: #{cm_model_forward.1} parent=1 // pred_fallthru
      _
    // Predicated region
    $region34: #{cm_model_forward.1} parent=1 // pred_check
      _
    $region35: #{cm_model_forward.1} parent=1 // pred_check_branch
      %250 = sbr.rel (0) target = $region37
    $region36: #{cm_model_forward.1} parent=1 // pred_region
      _
    $region37: #{cm_model_forward.1} parent=1 // pred_fallthru
      _
    %251 = vsyncpa [#allocation4], 1
    %252 = vsyncpa [#allocation6], 1

</llo_original>
